<compile_context>
chip_gen: v5e
topology: v5e:2x2
jax: 0.10.0
libtpu: 0.0.40
codegen_flags: <defaults>
</compile_context>

<pallas_src>
import functools

import jax
import jax.numpy as jnp
import numpy as np
from jax.experimental import pallas as pl
from jax.experimental.pallas import tpu as pltpu


# Complex elements per output lane-block.  128 == one full vreg width, so all
# output stores are lane-dense; keeping it at 128 (not larger) bounds the MXU
# cost of the one-hot unzip matmul so it stays hidden under the DMA.
_TC = 128
# Row-block candidates (multiples of 8), biggest first; 2048 rows keeps each
# double-buffered VMEM buffer at <= 2 MiB.
_ROW_BLOCK_CANDIDATES = (2048, 1024, 512, 256, 128, 64, 32, 16, 8)
# Below this many bytes of complex input, pallas_call launch overhead beats the
# traffic saving and XLA's fused extract+concat wins.  TODO(synk): re-tune.
_SMALL_INPUT_BYTES = 128 << 10


def _unzip_kernel(x_ref, s_ref, o_ref):
    """De-interleave one row block.

    x_ref: (tr, 2*tc) f32, interleaved [r, i, r, i, ...] along lanes.
    s_ref: (2*tc, 2*tc) f32 one-hot unzip matrix (constant across the grid).
    o_ref: (2, tr, tc) f32; [0] = real plane, [1] = imag plane.
    """
    tc = o_ref.shape[-1]
    # One-hot permutation on the MXU: exact (every output element is a single
    # x * 1.0 product accumulated in f32).  Mosaic has no lane-stride-2 load,
    # so this is the cheapest correct lane de-interleave.
    y = jnp.dot(x_ref[...], s_ref[...], preferred_element_type=jnp.float32)
    o_ref[0, :, :] = y[:, :tc]
    o_ref[1, :, :] = y[:, tc:]


@functools.lru_cache(maxsize=None)
def _unzip_matrix(tc):
    s = np.zeros((2 * tc, 2 * tc), np.float32)
    j = np.arange(tc)
    s[2 * j, j] = 1.0            # even lanes (real) -> first tc output columns
    s[2 * j + 1, tc + j] = 1.0   # odd lanes (imag)  -> last tc output columns
    return jnp.asarray(s)


def _pick_block_rows(r):
    for tr in _ROW_BLOCK_CANDIDATES:
        if r % tr == 0:
            return tr
    if r <= 1024:
        # Small ragged row count: one full-extent block is always legal.
        return r
    return None  # large ragged shapes take the XLA fallback


def _as_interleaved_f32(x):
    """complex64 (...,) -> float32 (..., 2) view of the interleaved storage."""
    try:
        # Free reinterpretation: complex64 is stored as (real, imag) f32 pairs.
        return jax.lax.bitcast_convert_type(x, jnp.float32)
    except Exception:
        # Some JAX/XLA versions reject complex bitcasts; fall back to an
        # explicit stack (costs one extra HBM pass but keeps exact semantics).
        return jnp.stack((jnp.real(x), jnp.imag(x)), axis=-1)


def _to_real_pallas(xf, out_shape):
    """xf: float32 (..., 2) interleaved pairs; returns float32 of `out_shape`."""
    n = xf.size // 2                       # number of complex elements
    r = n // _TC                           # rows of the 2-D interleaved view
    tr = _pick_block_rows(r)
    xv = xf.reshape(r, 2 * _TC)            # metadata-only reshape
    s = _unzip_matrix(_TC)

    ov = pl.pallas_call(
        _unzip_kernel,
        out_shape=jax.ShapeDtypeStruct((2, r, _TC), jnp.float32),
        grid_spec=pltpu.PrefetchScalarGridSpec(
            num_scalar_prefetch=0,
            grid=(r // tr,),
            in_specs=[
                # Interleaved input tile: (tr, 256) f32, contiguous in HBM.
                pl.BlockSpec((tr, 2 * _TC), lambda i: (i, 0)),
                # Unzip matrix: constant block index -> fetched once and kept
                # resident in VMEM across grid steps.
                pl.BlockSpec((2 * _TC, 2 * _TC), lambda i: (0, 0)),
            ],
            # Both planes of the same row block: (2, tr, 128), lane-dense.
            out_specs=pl.BlockSpec((2, tr, _TC), lambda i: (0, i, 0)),
        ),
        compiler_params=pltpu.CompilerParams(
            # Row blocks are independent -> shard across v7x's 2 TensorCores.
            dimension_semantics=("parallel",)),
    )(xv, s)
    # (2, r, 128) -> (2B, C, H, W): contiguous, metadata-only reshape.
    return ov.reshape(out_shape)


def to_real(x, *, force_pallas=False):
    """Pallas equivalent of torch.cat((x.real, x.imag)) along dim 0."""
    out_shape = (2 * x.shape[0],) + tuple(x.shape[1:])

    def _xla_fallback():
        return jnp.concatenate([jnp.real(x), jnp.imag(x)], axis=0)

    if x.dtype != jnp.complex64:
        return _xla_fallback()
    n = x.size
    if n % _TC != 0 or _pick_block_rows(n // _TC) is None:
        # TODO(synk): pad/mask ragged element counts instead of falling back.
        return _xla_fallback()
    if not force_pallas and n * x.dtype.itemsize < _SMALL_INPUT_BYTES:
        return _xla_fallback()
    return _to_real_pallas(_as_interleaved_f32(x), out_shape)


if __name__ == "__main__":
    key = jax.random.PRNGKey(0)
    k_re, k_im = jax.random.split(key)

    B, C, H, W = 2, 4, 16, 16
    x_re = jax.random.normal(k_re, (B, C, H, W), dtype=jnp.float32)
    x_im = jax.random.normal(k_im, (B, C, H, W), dtype=jnp.float32)
    x = (x_re + 1j * x_im).astype(jnp.complex64)

    # Run the Pallas unzip kernel (force past the small-input fallback).
    out = to_real(x, force_pallas=True)
    out = jax.block_until_ready(out)

    # Reference: torch.cat((x.real, x.imag)) along dim 0.
    ref = jnp.concatenate([jnp.real(x), jnp.imag(x)], axis=0)
    assert out.shape == (2 * B, C, H, W), out.shape
    assert out.dtype == jnp.float32, out.dtype
    assert jnp.allclose(out, ref, rtol=1e-5, atol=1e-5), "mismatch vs reference"

    # Also exercise the small-input XLA fallback path.
    out_fb = to_real(x)
    jax.block_until_ready(out_fb)
    assert jnp.allclose(out_fb, ref), "fallback mismatch vs reference"

    print("KERNEL_OK")
</pallas_src>

<mosaic_0001>
module attributes {stable_mosaic.version = 11 : i64} {
  func.func @_unzip_kernel(%arg0: i32, %arg1: memref<16x256xf32, #tpu.memory_space<vmem>>, %arg2: memref<256x256xf32, #tpu.memory_space<vmem>>, %arg3: memref<2x16x128xf32, #tpu.memory_space<vmem>>) attributes {dimension_semantics = [#tpu.dimension_semantics<parallel>], iteration_bounds = array<i64: 1>, scalar_prefetch = 0 : i64, scratch_operands = 0 : i64, tpu.core_type = #tpu.core_type<tc>, window_params = [{transform_indices = @transform_0, window_bounds = array<i64: 16, 256>}, {pipeline_mode = #tpu.pipeline_mode<synchronous>, transform_indices = @transform_1, window_bounds = array<i64: 256, 256>}, {transform_indices = @transform_2, window_bounds = array<i64: 2, 16, 128>}]} {
    %c0 = arith.constant 0 : index
    %c0_0 = arith.constant 0 : index
    %0 = vector.load %arg1[%c0, %c0_0] : memref<16x256xf32, #tpu.memory_space<vmem>>, vector<16x256xf32>
    %c0_1 = arith.constant 0 : index
    %c0_2 = arith.constant 0 : index
    %1 = vector.load %arg2[%c0_1, %c0_2] : memref<256x256xf32, #tpu.memory_space<vmem>>, vector<256x256xf32>
    %cst = arith.constant dense<0.000000e+00> : vector<16x256xf32>
    %2 = tpu.matmul %0, %1, %cst {dimension_numbers = #tpu.dot_dimension_numbers<[1], [0], [0], [1], [0, 0, 1, 1], [], []>} : vector<16x256xf32>, vector<256x256xf32>, vector<16x256xf32> -> vector<16x256xf32>
    %3 = vector.extract_strided_slice %2 {offsets = [0, 0], sizes = [16, 128], strides = [1, 1]} : vector<16x256xf32> to vector<16x128xf32>
    %c0_3 = arith.constant 0 : index
    %c0_4 = arith.constant 0 : index
    %c0_5 = arith.constant 0 : index
    %4 = vector.load %arg3[%c0_3, %c0_4, %c0_5] : memref<2x16x128xf32, #tpu.memory_space<vmem>>, vector<1x16x128xf32>
    %5 = vector.shape_cast %4 : vector<1x16x128xf32> to vector<16x128xf32>
    %6 = vector.shape_cast %3 : vector<16x128xf32> to vector<1x16x128xf32>
    tpu.vector_store %arg3[%c0_3, %c0_4, %c0_5], %6 {strides = array<i32>} : memref<2x16x128xf32, #tpu.memory_space<vmem>>, vector<1x16x128xf32>,
    %7 = vector.extract_strided_slice %2 {offsets = [0, 128], sizes = [16, 128], strides = [1, 1]} : vector<16x256xf32> to vector<16x128xf32>
    %c1 = arith.constant 1 : index
    %c0_6 = arith.constant 0 : index
    %c0_7 = arith.constant 0 : index
    %8 = vector.load %arg3[%c1, %c0_6, %c0_7] : memref<2x16x128xf32, #tpu.memory_space<vmem>>, vector<1x16x128xf32>
    %9 = vector.shape_cast %8 : vector<1x16x128xf32> to vector<16x128xf32>
    %10 = vector.shape_cast %7 : vector<16x128xf32> to vector<1x16x128xf32>
    tpu.vector_store %arg3[%c1, %c0_6, %c0_7], %10 {strides = array<i32>} : memref<2x16x128xf32, #tpu.memory_space<vmem>>, vector<1x16x128xf32>,
    return
  }
  func.func @transform_0(%arg0: i32) -> (i32, i32) {
    %c0_i32 = arith.constant 0 : i32
    %c0_i32_0 = arith.constant 0 : i32
    return %arg0, %c0_i32 : i32, i32
  }
  func.func @transform_1(%arg0: i32) -> (i32, i32) {
    %c0_i32 = arith.constant 0 : i32
    %c0_i32_0 = arith.constant 0 : i32
    %c0_i32_1 = arith.constant 0 : i32
    return %c0_i32, %c0_i32_0 : i32, i32
  }
  func.func @transform_2(%arg0: i32) -> (i32, i32, i32) {
    %c0_i32 = arith.constant 0 : i32
    %c0_i32_0 = arith.constant 0 : i32
    %c0_i32_1 = arith.constant 0 : i32
    return %c0_i32, %arg0, %c0_i32_0 : i32, i32, i32
  }
}

</mosaic_0001>

<llo_original>
// kernel: tpu_custom_call.1
$region0: #{tpu_custom_call.1}
  #allocation0 [shape = 'u32[]', space=smem, size = 0x4, offset = 0x4, fixed_abs, tag = 'smem constant byte address 0x4 - core index']
  #allocation1 [shape = 'u32[72,128]{1,0:T(1,128)}', space=vmem, size = 0x9000, scoped, tag = 'internal scratch']
  %s0 = inlined_call_operand.hbm [shape: f32[16,256], index: 0, kind: input, shape index: {}]
  %s1 = inlined_call_operand.hbm [shape: f32[256,256], index: 1, kind: input, shape index: {}]
  %s2 = inlined_call_operand.hbm [shape: f32[2,16,128], index: 2, kind: output, shape index: {}]
  %s3 = sld [smem:[#allocation0]]
  $region26: #{tpu_custom_call.1} parent=0
    _
  %s5 = ssub.s32 1, %s3
  %s6 = scalar_select 0, %s5, %s3
  $region1: #{tpu_custom_call.1} parent=0
    #allocation2 [shape = 'u8[16384]{0}', space=vmem, size = 0x4000, scoped, tag = 'input window, operand 0, single buffered']
    #allocation3 [shape = 's32[1]{0}', space=sflag, size = 0x4, scoped, tag = 'scoped memory for tpu_custom_call.1']
    #allocation4 [shape = 's32[1]{0}', space=sflag, size = 0x4, scoped, tag = 'scoped memory for tpu_custom_call.1']
    #allocation5 [shape = 'u8[262144]{0}', space=vmem, size = 0x40000, scoped, tag = 'input window, operand 1, single buffered']
    #allocation6 [shape = 's32[1]{0}', space=sflag, size = 0x4, scoped, tag = 'scoped memory for tpu_custom_call.1']
    #allocation7 [shape = 'u8[16384]{0}', space=vmem, size = 0x4000, scoped, tag = 'output window, operand 0, single buffered']
    %7 = vsyncpa [#allocation3], 0
    %8 = vsyncpa [#allocation6], 0
    %9 = vsyncpa [#allocation4], 0
    // Predicated region
    $region2: #{tpu_custom_call.1} parent=1 // pred_check
      _
    $region3: #{tpu_custom_call.1} parent=1 // pred_check_branch
      %11 = sbr.rel (0) target = $region5
    $region4: #{tpu_custom_call.1} parent=1 // pred_region
      %13 = vsyncadd [#allocation3], 0
      %s14 = sshll.u32 %s0, 4
      %s15 = int_to_ptr.hbm [resolvable:$true] %s14
      %s16 = sshll.u32 [#allocation2], 4
      %s17 = int_to_ptr.vmem [resolvable:$true] %s16
      %22 = dma.hbm_to_vmem [thread:$0]  %s15, 512, %s17, [#allocation3], 256, 256, 16
    $region5: #{tpu_custom_call.1} parent=1 // pred_fallthru
      _
    // Predicated region
    $region6: #{tpu_custom_call.1} parent=1 // pred_check
      _
    $region7: #{tpu_custom_call.1} parent=1 // pred_check_branch
      %24 = sbr.rel (0) target = $region9
    $region8: #{tpu_custom_call.1} parent=1 // pred_region
      %26 = vsyncadd [#allocation6], 0
      %s27 = sshll.u32 %s1, 4
      %s28 = int_to_ptr.hbm [resolvable:$true] %s27
      %s29 = sshll.u32 [#allocation5], 4
      %s30 = int_to_ptr.vmem [resolvable:$true] %s29
      %35 = dma.hbm_to_vmem [thread:$0]  %s28, 8192, %s30, [#allocation6], 256, 256, 16
    $region9: #{tpu_custom_call.1} parent=1 // pred_fallthru
      _
    // Predicated region
    $region10: #{tpu_custom_call.1} parent=1 // pred_check
      _
    $region11: #{tpu_custom_call.1} parent=1 // pred_check_branch
      %37 = sbr.rel (0) target = $region13
    $region12: #{tpu_custom_call.1} parent=1 // pred_region
      %39 = dma.done [#allocation3], 512
    $region13: #{tpu_custom_call.1} parent=1 // pred_fallthru
      _
    // Predicated region
    $region14: #{tpu_custom_call.1} parent=1 // pred_check
      _
    $region15: #{tpu_custom_call.1} parent=1 // pred_check_branch
      %41 = sbr.rel (0) target = $region17
    $region16: #{tpu_custom_call.1} parent=1 // pred_region
      %43 = dma.done [#allocation6], 8192
    $region17: #{tpu_custom_call.1} parent=1 // pred_fallthru
      _
    %v44 = vld [vmem:[#allocation2] sm:$0xff]
    %v45 = vld [vmem:[#allocation2 + $0x8] sm:$0xff]
    %v46 = vld [vmem:[#allocation2 + $0x10] sm:$0xff]
    %v47 = vld [vmem:[#allocation2 + $0x18] sm:$0xff]
    %v48 = vld [vmem:[#allocation5] sm:$0xff]
    %v49 = vld [vmem:[#allocation5 + $0x8] sm:$0xff]
    %v50 = vld [vmem:[#allocation5 + $0x10] sm:$0xff]
    %v51 = vld [vmem:[#allocation5 + $0x18] sm:$0xff]
    %v52 = vld [vmem:[#allocation5 + $0x20] sm:$0xff]
    %v53 = vld [vmem:[#allocation5 + $0x28] sm:$0xff]
    %v54 = vld [vmem:[#allocation5 + $0x30] sm:$0xff]
    %v55 = vld [vmem:[#allocation5 + $0x38] sm:$0xff]
    %v56 = vld [vmem:[#allocation5 + $0x40] sm:$0xff]
    %v57 = vld [vmem:[#allocation5 + $0x48] sm:$0xff]
    %v58 = vld [vmem:[#allocation5 + $0x50] sm:$0xff]
    %v59 = vld [vmem:[#allocation5 + $0x58] sm:$0xff]
    %v60 = vld [vmem:[#allocation5 + $0x60] sm:$0xff]
    %v61 = vld [vmem:[#allocation5 + $0x68] sm:$0xff]
    %v62 = vld [vmem:[#allocation5 + $0x70] sm:$0xff]
    %v63 = vld [vmem:[#allocation5 + $0x78] sm:$0xff]
    %v64 = vld [vmem:[#allocation5 + $0x80] sm:$0xff]
    %v65 = vld [vmem:[#allocation5 + $0x88] sm:$0xff]
    %v66 = vld [vmem:[#allocation5 + $0x90] sm:$0xff]
    %v67 = vld [vmem:[#allocation5 + $0x98] sm:$0xff]
    %v68 = vld [vmem:[#allocation5 + $0xa0] sm:$0xff]
    %v69 = vld [vmem:[#allocation5 + $0xa8] sm:$0xff]
    %v70 = vld [vmem:[#allocation5 + $0xb0] sm:$0xff]
    %v71 = vld [vmem:[#allocation5 + $0xb8] sm:$0xff]
    %v72 = vld [vmem:[#allocation5 + $0xc0] sm:$0xff]
    %v73 = vld [vmem:[#allocation5 + $0xc8] sm:$0xff]
    %v74 = vld [vmem:[#allocation5 + $0xd0] sm:$0xff]
    %v75 = vld [vmem:[#allocation5 + $0xd8] sm:$0xff]
    %v76 = vld [vmem:[#allocation5 + $0xe0] sm:$0xff]
    %v77 = vld [vmem:[#allocation5 + $0xe8] sm:$0xff]
    %v78 = vld [vmem:[#allocation5 + $0xf0] sm:$0xff]
    %v79 = vld [vmem:[#allocation5 + $0xf8] sm:$0xff]
    %v80 = vld [vmem:[#allocation5 + $0x100] sm:$0xff]
    %v81 = vld [vmem:[#allocation5 + $0x108] sm:$0xff]
    %v82 = vld [vmem:[#allocation5 + $0x110] sm:$0xff]
    %v83 = vld [vmem:[#allocation5 + $0x118] sm:$0xff]
    %v84 = vld [vmem:[#allocation5 + $0x120] sm:$0xff]
    %v85 = vld [vmem:[#allocation5 + $0x128] sm:$0xff]
    %v86 = vld [vmem:[#allocation5 + $0x130] sm:$0xff]
    %v87 = vld [vmem:[#allocation5 + $0x138] sm:$0xff]
    %v88 = vld [vmem:[#allocation5 + $0x140] sm:$0xff]
    %v89 = vld [vmem:[#allocation5 + $0x148] sm:$0xff]
    %v90 = vld [vmem:[#allocation5 + $0x150] sm:$0xff]
    %v91 = vld [vmem:[#allocation5 + $0x158] sm:$0xff]
    %v92 = vld [vmem:[#allocation5 + $0x160] sm:$0xff]
    %v93 = vld [vmem:[#allocation5 + $0x168] sm:$0xff]
    %v94 = vld [vmem:[#allocation5 + $0x170] sm:$0xff]
    %v95 = vld [vmem:[#allocation5 + $0x178] sm:$0xff]
    %v96 = vld [vmem:[#allocation5 + $0x180] sm:$0xff]
    %v97 = vld [vmem:[#allocation5 + $0x188] sm:$0xff]
    %v98 = vld [vmem:[#allocation5 + $0x190] sm:$0xff]
    %v99 = vld [vmem:[#allocation5 + $0x198] sm:$0xff]
    %v100 = vld [vmem:[#allocation5 + $0x1a0] sm:$0xff]
    %v101 = vld [vmem:[#allocation5 + $0x1a8] sm:$0xff]
    %v102 = vld [vmem:[#allocation5 + $0x1b0] sm:$0xff]
    %v103 = vld [vmem:[#allocation5 + $0x1b8] sm:$0xff]
    %v104 = vld [vmem:[#allocation5 + $0x1c0] sm:$0xff]
    %v105 = vld [vmem:[#allocation5 + $0x1c8] sm:$0xff]
    %v106 = vld [vmem:[#allocation5 + $0x1d0] sm:$0xff]
    %v107 = vld [vmem:[#allocation5 + $0x1d8] sm:$0xff]
    %v108 = vld [vmem:[#allocation5 + $0x1e0] sm:$0xff]
    %v109 = vld [vmem:[#allocation5 + $0x1e8] sm:$0xff]
    %v110 = vld [vmem:[#allocation5 + $0x1f0] sm:$0xff]
    %v111 = vld [vmem:[#allocation5 + $0x1f8] sm:$0xff]
    %112 = vmatpush.msra.mxu0 %v78
    %113 = vmatpush.msra.mxu0 %v76
    %114 = vmatpush.msra.mxu0 %v74
    %115 = vmatpush.msra.mxu0 %v72
    %116 = vmatpush.msra.mxu0 %v70
    %117 = vmatpush.msra.mxu0 %v68
    %118 = vmatpush.msra.mxu0 %v66
    %119 = vmatpush.msra.mxu0 %v64
    %120 = vmatpush.msra.mxu0 %v62
    %121 = vmatpush.msra.mxu0 %v60
    %122 = vmatpush.msra.mxu0 %v58
    %123 = vmatpush.msra.mxu0 %v56
    %124 = vmatpush.msra.mxu0 %v54
    %125 = vmatpush.msra.mxu0 %v52
    %126 = vmatpush.msra.mxu0 %v50
    %127 = vmatpush.msra.mxu0 %v48
    %128 = vmatmul.f32.gmra.mxu0 %v44
    %v129 = vpop.f32.mrf.mxu0
    %v130 = vadd.f32 0.0, %v129
    %131 = vmatmul.f32.gmra.mxu0 %v46
    %v132 = vpop.f32.mrf.mxu0
    %v133 = vadd.f32 0.0, %v132
    %134 = vdwg.mxu0
    %135 = vmatpush.msra.mxu0 %v110
    %136 = vmatpush.msra.mxu0 %v108
    %137 = vmatpush.msra.mxu0 %v106
    %138 = vmatpush.msra.mxu0 %v104
    %139 = vmatpush.msra.mxu0 %v102
    %140 = vmatpush.msra.mxu0 %v100
    %141 = vmatpush.msra.mxu0 %v98
    %142 = vmatpush.msra.mxu0 %v96
    %143 = vmatpush.msra.mxu0 %v94
    %144 = vmatpush.msra.mxu0 %v92
    %145 = vmatpush.msra.mxu0 %v90
    %146 = vmatpush.msra.mxu0 %v88
    %147 = vmatpush.msra.mxu0 %v86
    %148 = vmatpush.msra.mxu0 %v84
    %149 = vmatpush.msra.mxu0 %v82
    %150 = vmatpush.msra.mxu0 %v80
    %151 = vmatmul.f32.gmra.mxu0 %v45
    %v152 = vpop.f32.mrf.mxu0
    %v153 = vadd.f32 %v130, %v152
    %154 = vmatmul.f32.gmra.mxu0 %v47
    %v155 = vpop.f32.mrf.mxu0
    %v156 = vadd.f32 %v133, %v155
    %157 = vdwg.mxu0
    %158 = vmatpush.msra.mxu0 %v79
    %159 = vmatpush.msra.mxu0 %v77
    %160 = vmatpush.msra.mxu0 %v75
    %161 = vmatpush.msra.mxu0 %v73
    %162 = vmatpush.msra.mxu0 %v71
    %163 = vmatpush.msra.mxu0 %v69
    %164 = vmatpush.msra.mxu0 %v67
    %165 = vmatpush.msra.mxu0 %v65
    %166 = vmatpush.msra.mxu0 %v63
    %167 = vmatpush.msra.mxu0 %v61
    %168 = vmatpush.msra.mxu0 %v59
    %169 = vmatpush.msra.mxu0 %v57
    %170 = vmatpush.msra.mxu0 %v55
    %171 = vmatpush.msra.mxu0 %v53
    %172 = vmatpush.msra.mxu0 %v51
    %173 = vmatpush.msra.mxu0 %v49
    %174 = vmatmul.f32.gmra.mxu0 %v44
    %v175 = vpop.f32.mrf.mxu0
    %v176 = vadd.f32 0.0, %v175
    %177 = vmatmul.f32.gmra.mxu0 %v46
    %v178 = vpop.f32.mrf.mxu0
    %v179 = vadd.f32 0.0, %v178
    %180 = vdwg.mxu0
    %181 = vmatpush.msra.mxu0 %v111
    %182 = vmatpush.msra.mxu0 %v109
    %183 = vmatpush.msra.mxu0 %v107
    %184 = vmatpush.msra.mxu0 %v105
    %185 = vmatpush.msra.mxu0 %v103
    %186 = vmatpush.msra.mxu0 %v101
    %187 = vmatpush.msra.mxu0 %v99
    %188 = vmatpush.msra.mxu0 %v97
    %189 = vmatpush.msra.mxu0 %v95
    %190 = vmatpush.msra.mxu0 %v93
    %191 = vmatpush.msra.mxu0 %v91
    %192 = vmatpush.msra.mxu0 %v89
    %193 = vmatpush.msra.mxu0 %v87
    %194 = vmatpush.msra.mxu0 %v85
    %195 = vmatpush.msra.mxu0 %v83
    %196 = vmatpush.msra.mxu0 %v81
    %197 = vmatmul.f32.gmra.mxu0 %v45
    %v198 = vpop.f32.mrf.mxu0
    %v199 = vadd.f32 %v176, %v198
    %200 = vmatmul.f32.gmra.mxu0 %v47
    %v201 = vpop.f32.mrf.mxu0
    %v202 = vadd.f32 %v179, %v201
    %203 = vdwg.mxu0
    %204 = vst [vmem:[#allocation7] sm:$0xff] %v153
    %205 = vst [vmem:[#allocation7 + $0x8] sm:$0xff] %v156
    %s206 = scalar_lea.vmem [#allocation7], 16
    %207 = vst [vmem:[%s206] sm:$0xff] %v199
    %208 = vst [vmem:[%s206 + $0x8] sm:$0xff] %v202
    // Predicated region
    $region18: #{tpu_custom_call.1} parent=1 // pred_check
      _
    $region19: #{tpu_custom_call.1} parent=1 // pred_check_branch
      %210 = sbr.rel (0) target = $region21
    $region20: #{tpu_custom_call.1} parent=1 // pred_region
      %212 = vsyncadd [#allocation4], 0
      %s213 = sshll.u32 [#allocation7], 4
      %s214 = int_to_ptr.vmem [resolvable:$true] %s213
      %s215 = sshll.u32 %s2, 4
      %s216 = int_to_ptr.hbm [resolvable:$true] %s215
      %221 = dma.vmem_to_hbm [thread:$0]  %s214, 512, %s216, [#allocation4], 128, 128, 8
    $region21: #{tpu_custom_call.1} parent=1 // pred_fallthru
      _
    // Predicated region
    $region22: #{tpu_custom_call.1} parent=1 // pred_check
      _
    $region23: #{tpu_custom_call.1} parent=1 // pred_check_branch
      %223 = sbr.rel (0) target = $region25
    $region24: #{tpu_custom_call.1} parent=1 // pred_region
      %225 = dma.done [#allocation4], 512
    $region25: #{tpu_custom_call.1} parent=1 // pred_fallthru
      _
    %226 = vsyncpa [#allocation3], 1
    %227 = vsyncpa [#allocation6], 1
    %228 = vsyncpa [#allocation4], 1

</llo_original>
